<compile_context>
chip_gen: v5e
topology: v5e:2x2
jax: 0.10.0
libtpu: 0.0.40
codegen_flags: <defaults>
</compile_context>

<pallas_src>
import functools

import jax
import jax.numpy as jnp
from jax.experimental import pallas as pl
from jax.experimental.pallas import tpu as pltpu


# ----------------------------------------------------------------------------
# Kernels (operate on lane-dense 2-D tiles)
# ----------------------------------------------------------------------------
def _pe_add_kernel(x_ref, pe_ref, o_ref, *, batch):
    # x_ref: (ts, B*D), pe_ref: (ts, D) -> tile pe across the batch copies
    pe_row = jnp.tile(pe_ref[...], (1, batch))            # (ts, B*D)
    o_ref[...] = (x_ref[...] + pe_row).astype(o_ref.dtype)


def _pe_add_dropout_kernel(x_ref, pe_ref, u_ref, o_ref, *, batch, rate):
    # Inverted dropout (torch.nn.Dropout training semantics): keep with
    # prob 1-rate, survivors scaled by 1/(1-rate).  u_ref holds iid U[0,1).
    keep_prob = 1.0 - rate
    pe_row = jnp.tile(pe_ref[...], (1, batch))            # (ts, B*D)
    y = x_ref[...] + pe_row
    keep = u_ref[...] < jnp.float32(keep_prob)
    o_ref[...] = jnp.where(keep, y * jnp.float32(1.0 / keep_prob),
                           jnp.zeros_like(y)).astype(o_ref.dtype)


# ----------------------------------------------------------------------------
# Tile selection
# ----------------------------------------------------------------------------
def _choose_ts(S, row_bytes, n_row_arrays):
    # Big tiles amortize the ~0.35us/grid-step overhead; cap the
    # double-buffered working set at ~40 MiB so it fits v7x's 64 MiB VMEM
    # (and stays well inside the explicit 48 MiB limit below).
    budget = 40 * 1024 * 1024
    cap = max(8, budget // (2 * n_row_arrays * max(row_bytes, 1)))
    ts = min(S, 512, cap)
    ts -= ts % 8                      # keep (8, 128)-tiling friendly
    if ts < 8:
        ts = S                        # tiny S: single full-extent block
    return max(ts, 1)


# ----------------------------------------------------------------------------
# Wrapper
# ----------------------------------------------------------------------------
def learnable_positional_encoding(x, pe, *, dropout_rate=0.1, training=False,
                                  rng_key=None, use_pallas=None):
    """x: [S, B, D]; pe: [max_len, 1, D] (learned parameter)."""
    S, B, D = x.shape
    max_len = pe.shape[0]
    assert max_len >= S and pe.shape[1] == 1 and pe.shape[2] == D

    dropout_active = training and dropout_rate > 0.0
    if dropout_active and dropout_rate >= 1.0:
        return jnp.zeros_like(x)      # everything dropped

    if use_pallas is None:
        # For tiny eval-mode calls, a fused XLA broadcast-add beats any
        # pallas_call launch; always use the kernel when dropout is active
        # or the tensor is large.
        use_pallas = dropout_active or (x.size >= (1 << 16))
    if not use_pallas and not dropout_active:
        return (x + pe[:S]).astype(x.dtype)

    # ---- lane-dense 2-D views (free reshapes, no data movement) ----
    row = B * D
    x2 = x.reshape(S, row)                    # (S, B*D)
    pe2 = pe.reshape(max_len, D)              # full pe; BlockSpec picks rows

    n_row_arrays = 3 if dropout_active else 2             # x, (noise), out
    ts = _choose_ts(S, row * x.dtype.itemsize, n_row_arrays)
    grid = (pl.cdiv(S, ts),)

    row_spec = pl.BlockSpec((ts, row), lambda i: (i, 0))   # x / noise / out
    pe_spec = pl.BlockSpec((ts, D), lambda i: (i, 0))
    out_shape = jax.ShapeDtypeStruct((S, row), x.dtype)

    compiler_params = pltpu.CompilerParams(
        dimension_semantics=("parallel",),
        vmem_limit_bytes=48 * 1024 * 1024,
    )

    if not dropout_active:
        out2 = pl.pallas_call(
            functools.partial(_pe_add_kernel, batch=B),
            grid=grid,
            in_specs=[row_spec, pe_spec],
            out_specs=row_spec,
            out_shape=out_shape,
            compiler_params=compiler_params,
        )(x2, pe2)
    else:
        if rng_key is None:
            rng_key = jax.random.PRNGKey(0)
        noise = jax.random.uniform(rng_key, (S, row), dtype=jnp.float32)
        out2 = pl.pallas_call(
            functools.partial(_pe_add_dropout_kernel, batch=B,
                              rate=float(dropout_rate)),
            grid=grid,
            in_specs=[row_spec, pe_spec, row_spec],
            out_specs=row_spec,
            out_shape=out_shape,
            compiler_params=compiler_params,
        )(x2, pe2, noise)

    return out2.reshape(S, B, D)


# ----------------------------------------------------------------------------
# Main
# ----------------------------------------------------------------------------
if __name__ == "__main__":
    d_model = 32
    max_len = 1024
    seq = 8
    batch = 2

    key = jax.random.PRNGKey(0)
    k_pe, k_x, k_drop = jax.random.split(key, 3)

    # nn.init.uniform_(self.pe, -0.02, 0.02), shape (max_len, 1, d_model)
    pe = jax.random.uniform(k_pe, (max_len, 1, d_model),
                            minval=-0.02, maxval=0.02, dtype=jnp.float32)
    # input x: (seq, batch, d_model)
    x = jax.random.normal(k_x, (seq, batch, d_model), dtype=jnp.float32)

    ref = x + pe[:seq]

    # eval-mode forward through the Pallas kernel (forced; the auto heuristic
    # would let XLA fuse an add this small).
    out_eval = learnable_positional_encoding(x, pe, dropout_rate=0.1,
                                             training=False, use_pallas=True)
    out_eval = jax.block_until_ready(out_eval)
    assert out_eval.shape == x.shape and out_eval.dtype == x.dtype
    assert jnp.allclose(out_eval, ref, atol=1e-6, rtol=1e-6)

    # auto heuristic (tiny eval -> plain XLA fusion) must match as well.
    out_auto = jax.block_until_ready(
        learnable_positional_encoding(x, pe, dropout_rate=0.1, training=False))
    assert jnp.allclose(out_auto, ref, atol=1e-6, rtol=1e-6)

    # training-mode forward: add + inverted dropout inside the kernel.
    rate = 0.1
    out_train = learnable_positional_encoding(x, pe, dropout_rate=rate,
                                              training=True, rng_key=k_drop)
    out_train = jax.block_until_ready(out_train)
    assert out_train.shape == x.shape and out_train.dtype == x.dtype
    scaled = ref / (1.0 - rate)
    is_zero = jnp.isclose(out_train, 0.0, atol=1e-6)
    is_kept = jnp.isclose(out_train, scaled, atol=1e-5, rtol=1e-5)
    assert bool(jnp.all(is_zero | is_kept))

    print("KERNEL_OK")
</pallas_src>

<mosaic_0001>
module attributes {stable_mosaic.version = 11 : i64} {
  func.func @_pe_add_kernel(%arg0: i32, %arg1: memref<8x64xf32, #tpu.memory_space<vmem>>, %arg2: memref<8x32xf32, #tpu.memory_space<vmem>>, %arg3: memref<8x64xf32, #tpu.memory_space<vmem>>) attributes {dimension_semantics = [#tpu.dimension_semantics<parallel>], iteration_bounds = array<i64: 1>, scalar_prefetch = 0 : i64, scratch_operands = 0 : i64, tpu.core_type = #tpu.core_type<tc>, window_params = [{transform_indices = @transform_0, window_bounds = array<i64: 8, 64>}, {transform_indices = @transform_1, window_bounds = array<i64: 8, 32>}, {transform_indices = @transform_2, window_bounds = array<i64: 8, 64>}]} {
    %c0 = arith.constant 0 : index
    %c0_0 = arith.constant 0 : index
    %0 = vector.load %arg2[%c0, %c0_0] : memref<8x32xf32, #tpu.memory_space<vmem>>, vector<8x32xf32>
    %1 = tpu.concatenate %0, %0 in 1 : vector<8x32xf32>, vector<8x32xf32> -> vector<8x64xf32>
    %c0_1 = arith.constant 0 : index
    %c0_2 = arith.constant 0 : index
    %2 = vector.load %arg1[%c0_1, %c0_2] : memref<8x64xf32, #tpu.memory_space<vmem>>, vector<8x64xf32>
    %3 = arith.addf %2, %1 : vector<8x64xf32>
    %c0_3 = arith.constant 0 : index
    %c0_4 = arith.constant 0 : index
    %4 = vector.load %arg3[%c0_3, %c0_4] : memref<8x64xf32, #tpu.memory_space<vmem>>, vector<8x64xf32>
    tpu.vector_store %arg3[%c0_3, %c0_4], %3 {strides = array<i32>} : memref<8x64xf32, #tpu.memory_space<vmem>>, vector<8x64xf32>,
    return
  }
  func.func @transform_0(%arg0: i32) -> (i32, i32) {
    %c0_i32 = arith.constant 0 : i32
    %c0_i32_0 = arith.constant 0 : i32
    return %arg0, %c0_i32 : i32, i32
  }
  func.func @transform_1(%arg0: i32) -> (i32, i32) {
    %c0_i32 = arith.constant 0 : i32
    %c0_i32_0 = arith.constant 0 : i32
    return %arg0, %c0_i32 : i32, i32
  }
  func.func @transform_2(%arg0: i32) -> (i32, i32) {
    %c0_i32 = arith.constant 0 : i32
    %c0_i32_0 = arith.constant 0 : i32
    return %arg0, %c0_i32 : i32, i32
  }
}

</mosaic_0001>

<llo_original>
// kernel: tpu_custom_call.1
$region0: #{tpu_custom_call.1}
  #allocation0 [shape = 'u32[]', space=smem, size = 0x4, offset = 0x4, fixed_abs, tag = 'smem constant byte address 0x4 - core index']
  #allocation1 [shape = 'u32[72,128]{1,0:T(1,128)}', space=vmem, size = 0x9000, scoped, tag = 'internal scratch']
  %s0 = inlined_call_operand.vmem [shape: f32[8,64], index: 0, kind: input, shape index: {}]
  %s1 = inlined_call_operand.vmem [shape: f32[1024,32], index: 1, kind: input, shape index: {}]
  %s2 = inlined_call_operand.hbm [shape: f32[8,64], index: 2, kind: output, shape index: {}]
  %s3 = sld [smem:[#allocation0]]
  $region18: #{tpu_custom_call.1} parent=0
    _
  %s5 = ssub.s32 1, %s3
  %s6 = scalar_select 0, %s5, %s3
  $region1: #{tpu_custom_call.1} parent=0
    #allocation2 [shape = 'u8[4096]{0}', space=vmem, size = 0x1000, scoped, tag = 'output window, operand 0, single buffered']
    #allocation3 [shape = 's32[1]{0}', space=sflag, size = 0x4, scoped, tag = 'scoped memory for tpu_custom_call.1']
    %7 = vsyncpa [#allocation3], 0
    // Predicated region
    $region2: #{tpu_custom_call.1} parent=1 // pred_check
      _
    $region3: #{tpu_custom_call.1} parent=1 // pred_check_branch
      %9 = sbr.rel (0) target = $region5
    $region4: #{tpu_custom_call.1} parent=1 // pred_region
      _
    $region5: #{tpu_custom_call.1} parent=1 // pred_fallthru
      _
    // Predicated region
    $region6: #{tpu_custom_call.1} parent=1 // pred_check
      _
    $region7: #{tpu_custom_call.1} parent=1 // pred_check_branch
      %11 = sbr.rel (0) target = $region9
    $region8: #{tpu_custom_call.1} parent=1 // pred_region
      _
    $region9: #{tpu_custom_call.1} parent=1 // pred_fallthru
      _
    %v12 = vld [vmem:[%s1] sm:$0xff]
    %14 = vrot.lane.b32.xlu0 %v12, 32
    %v15 = vpop.permute.xlu0 %14
    %vm17 = vcmask 261120
    %v18 = vsel %vm17, %v12, %v15
    %v19 = vld [vmem:[%s0] sm:$0xff]
    %v20 = vadd.f32 %v19, %v18
    %vm21 = vcmask 523264
    %22 = vst.msk [vmem:[#allocation2] sm:$0xff] %vm21, %v20
    // Predicated region
    $region10: #{tpu_custom_call.1} parent=1 // pred_check
      _
    $region11: #{tpu_custom_call.1} parent=1 // pred_check_branch
      %24 = sbr.rel (0) target = $region13
    $region12: #{tpu_custom_call.1} parent=1 // pred_region
      %26 = vsyncadd [#allocation3], 0
      %s28 = sshll.u32 [#allocation2], 4
      %s29 = int_to_ptr.vmem [resolvable:$true] %s28
      %s30 = sshll.u32 %s2, 4
      %s31 = int_to_ptr.hbm [resolvable:$true] %s30
      %33 = dma.vmem_to_hbm [thread:$0]  %s29, 128, %s31, [#allocation3]
    $region13: #{tpu_custom_call.1} parent=1 // pred_fallthru
      _
    // Predicated region
    $region14: #{tpu_custom_call.1} parent=1 // pred_check
      _
    $region15: #{tpu_custom_call.1} parent=1 // pred_check_branch
      %35 = sbr.rel (0) target = $region17
    $region16: #{tpu_custom_call.1} parent=1 // pred_region
      %37 = dma.done [#allocation3], 128
    $region17: #{tpu_custom_call.1} parent=1 // pred_fallthru
      _
    %38 = vsyncpa [#allocation3], 1

</llo_original>
